<compile_context>
chip_gen: v5e
topology: v5e:2x2
jax: 0.10.0
libtpu: 0.0.40
codegen_flags: <defaults>
</compile_context>

<pallas_src>
import jax
import jax.numpy as jnp
from jax.experimental import pallas as pl
from jax.experimental.pallas import tpu as pltpu


# ----------------------------------------------------------------------------
# Fused 1x1-conv (channel matmul) + bias + ReLU kernel
# ----------------------------------------------------------------------------
def _par_kernel(x_ref, w_ref, b_ref, o_ref):
    # x_ref: (nb, C_in, hw_blk)  bf16
    # w_ref: (C_out, C_in)       bf16
    # b_ref: (C_out, 1)          f32
    # o_ref: (nb, C_out, hw_blk) f32
    w = w_ref[...]
    bias = b_ref[...]
    nb = x_ref.shape[0]
    for n in range(nb):  # static unroll; nb is small
        y = jnp.dot(w, x_ref[n], preferred_element_type=jnp.float32)
        o_ref[n] = jnp.maximum(y + bias, 0.0).astype(o_ref.dtype)


def par_forward(x_nchw, w, b, *, lane_chunk=4096, batch_block=8):
    """ReLU(Conv2d(C_in, C_out, kernel_size=1)(x)) for NCHW input.

    x_nchw : (N, C_in, H, W) float32
    w      : (C_out, C_in, 1, 1) float32   (PyTorch conv weight layout)
    b      : (C_out,) float32
    returns: (N, C_out, H, W) float32
    """
    N, C_in, H, W = x_nchw.shape
    C_out = w.shape[0]
    HW = H * W

    # Free, contiguous reshapes + bf16 cast of the big operands.
    x = x_nchw.reshape(N, C_in, HW).astype(jnp.bfloat16)
    w2 = w.reshape(C_out, C_in).astype(jnp.bfloat16)
    b2 = b.astype(jnp.float32).reshape(C_out, 1)

    # HW (lane) block: full extent when small or not 128-aligned, otherwise a
    # lane-dense chunk (multiple of 128 that divides HW -> no partial blocks,
    # no wrapper pad/slice).
    if HW % 128 == 0 and HW > lane_chunk:
        hw_blk = lane_chunk
        while HW % hw_blk != 0:
            hw_blk -= 128
    else:
        hw_blk = HW

    # Batch block: several images per grid step (fewer, bigger DMAs); pick a
    # divisor of N so there are no partial blocks.
    nb = min(N, batch_block)
    while N % nb != 0:
        nb -= 1

    grid = (N // nb, HW // hw_blk)

    out = pl.pallas_call(
        _par_kernel,
        out_shape=jax.ShapeDtypeStruct((N, C_out, HW), jnp.float32),
        grid_spec=pltpu.PrefetchScalarGridSpec(
            num_scalar_prefetch=0,
            grid=grid,
            in_specs=[
                pl.BlockSpec((nb, C_in, hw_blk), lambda i, j: (i, 0, j)),
                pl.BlockSpec((C_out, C_in), lambda i, j: (0, 0)),   # full weight
                pl.BlockSpec((C_out, 1), lambda i, j: (0, 0)),      # full bias
            ],
            out_specs=pl.BlockSpec((nb, C_out, hw_blk), lambda i, j: (i, 0, j)),
        ),
        compiler_params=pltpu.CompilerParams(
            dimension_semantics=("parallel", "parallel"),
        ),
    )(x, w2, b2)

    return out.reshape(N, C_out, H, W)


# ----------------------------------------------------------------------------
# Parameter init (PyTorch-default-style uniform(-1/sqrt(fan_in), 1/sqrt(fan_in)))
# ----------------------------------------------------------------------------
def init_params(key, c_in=64, c_out=10):
    k_w, k_b = jax.random.split(key)
    bound = 1.0 / jnp.sqrt(float(c_in * 1 * 1))
    w = jax.random.uniform(k_w, (c_out, c_in, 1, 1), jnp.float32, -bound, bound)
    b = jax.random.uniform(k_b, (c_out,), jnp.float32, -bound, bound)
    return w, b


if __name__ == "__main__":
    key = jax.random.PRNGKey(0)
    k_x, k_p = jax.random.split(key)

    # PAR expects 64 input channels; small spatial size, batch=2.
    N, C_in, H, W = 2, 64, 16, 16
    C_out = 10

    x = jax.random.normal(k_x, (N, C_in, H, W), jnp.float32)
    w, b = init_params(k_p, C_in, C_out)

    out = par_forward(x, w, b)
    jax.block_until_ready(out)

    # Plain-JAX f32 reference check of relu(conv1x1(x) + b)
    ref = jnp.einsum("nchw,oc->nohw", x, w.reshape(C_out, C_in))
    ref = jnp.maximum(ref + b.reshape(1, C_out, 1, 1), 0.0)

    assert out.shape == (N, C_out, H, W), out.shape
    assert jnp.allclose(out, ref, atol=2e-2, rtol=2e-2), float(
        jnp.max(jnp.abs(out - ref))
    )
    print("KERNEL_OK")
</pallas_src>

<mosaic_0001>
module attributes {stable_mosaic.version = 11 : i64} {
  func.func @_par_kernel(%arg0: i32, %arg1: i32, %arg2: memref<2x64x256xbf16, #tpu.memory_space<vmem>>, %arg3: memref<10x64xbf16, #tpu.memory_space<vmem>>, %arg4: memref<10x1xf32, #tpu.memory_space<vmem>>, %arg5: memref<2x10x256xf32, #tpu.memory_space<vmem>>) attributes {dimension_semantics = [#tpu.dimension_semantics<parallel>, #tpu.dimension_semantics<parallel>], iteration_bounds = array<i64: 1, 1>, scalar_prefetch = 0 : i64, scratch_operands = 0 : i64, tpu.core_type = #tpu.core_type<tc>, window_params = [{transform_indices = @transform_0, window_bounds = array<i64: 2, 64, 256>}, {pipeline_mode = #tpu.pipeline_mode<synchronous>, transform_indices = @transform_1, window_bounds = array<i64: 10, 64>}, {pipeline_mode = #tpu.pipeline_mode<synchronous>, transform_indices = @transform_2, window_bounds = array<i64: 10, 1>}, {transform_indices = @transform_3, window_bounds = array<i64: 2, 10, 256>}]} {
    %c0 = arith.constant 0 : index
    %c0_0 = arith.constant 0 : index
    %0 = vector.load %arg3[%c0, %c0_0] : memref<10x64xbf16, #tpu.memory_space<vmem>>, vector<10x64xbf16>
    %c0_1 = arith.constant 0 : index
    %c0_2 = arith.constant 0 : index
    %1 = vector.load %arg4[%c0_1, %c0_2] : memref<10x1xf32, #tpu.memory_space<vmem>>, vector<10x1xf32>
    %c0_3 = arith.constant 0 : index
    %c0_4 = arith.constant 0 : index
    %c0_5 = arith.constant 0 : index
    %2 = vector.load %arg2[%c0_3, %c0_4, %c0_5] : memref<2x64x256xbf16, #tpu.memory_space<vmem>>, vector<1x64x256xbf16>
    %3 = vector.shape_cast %2 : vector<1x64x256xbf16> to vector<64x256xbf16>
    %cst = arith.constant dense<0.000000e+00> : vector<10x256xf32>
    %4 = tpu.matmul %0, %3, %cst {dimension_numbers = #tpu.dot_dimension_numbers<[1], [0], [0], [1], [0, 0, 1, 1], [], []>} : vector<10x64xbf16>, vector<64x256xbf16>, vector<10x256xf32> -> vector<10x256xf32>
    %5 = vector.broadcast %1 : vector<10x1xf32> to vector<10x256xf32>
    %6 = arith.addf %4, %5 : vector<10x256xf32>
    %cst_6 = arith.constant 0.000000e+00 : f32
    %7 = vector.broadcast %cst_6 : f32 to vector<10x256xf32>
    %8 = arith.maximumf %6, %7 : vector<10x256xf32>
    %c0_7 = arith.constant 0 : index
    %c0_8 = arith.constant 0 : index
    %c0_9 = arith.constant 0 : index
    %9 = vector.load %arg5[%c0_7, %c0_8, %c0_9] : memref<2x10x256xf32, #tpu.memory_space<vmem>>, vector<1x10x256xf32>
    %10 = vector.shape_cast %9 : vector<1x10x256xf32> to vector<10x256xf32>
    %11 = vector.shape_cast %8 : vector<10x256xf32> to vector<1x10x256xf32>
    tpu.vector_store %arg5[%c0_7, %c0_8, %c0_9], %11 {strides = array<i32>} : memref<2x10x256xf32, #tpu.memory_space<vmem>>, vector<1x10x256xf32>,
    %c1 = arith.constant 1 : index
    %c0_10 = arith.constant 0 : index
    %c0_11 = arith.constant 0 : index
    %12 = vector.load %arg2[%c1, %c0_10, %c0_11] : memref<2x64x256xbf16, #tpu.memory_space<vmem>>, vector<1x64x256xbf16>
    %13 = vector.shape_cast %12 : vector<1x64x256xbf16> to vector<64x256xbf16>
    %cst_12 = arith.constant dense<0.000000e+00> : vector<10x256xf32>
    %14 = tpu.matmul %0, %13, %cst_12 {dimension_numbers = #tpu.dot_dimension_numbers<[1], [0], [0], [1], [0, 0, 1, 1], [], []>} : vector<10x64xbf16>, vector<64x256xbf16>, vector<10x256xf32> -> vector<10x256xf32>
    %15 = vector.broadcast %1 : vector<10x1xf32> to vector<10x256xf32>
    %16 = arith.addf %14, %15 : vector<10x256xf32>
    %cst_13 = arith.constant 0.000000e+00 : f32
    %17 = vector.broadcast %cst_13 : f32 to vector<10x256xf32>
    %18 = arith.maximumf %16, %17 : vector<10x256xf32>
    %c1_14 = arith.constant 1 : index
    %c0_15 = arith.constant 0 : index
    %c0_16 = arith.constant 0 : index
    %19 = vector.load %arg5[%c1_14, %c0_15, %c0_16] : memref<2x10x256xf32, #tpu.memory_space<vmem>>, vector<1x10x256xf32>
    %20 = vector.shape_cast %19 : vector<1x10x256xf32> to vector<10x256xf32>
    %21 = vector.shape_cast %18 : vector<10x256xf32> to vector<1x10x256xf32>
    tpu.vector_store %arg5[%c1_14, %c0_15, %c0_16], %21 {strides = array<i32>} : memref<2x10x256xf32, #tpu.memory_space<vmem>>, vector<1x10x256xf32>,
    return
  }
  func.func @transform_0(%arg0: i32, %arg1: i32) -> (i32, i32, i32) {
    %c0_i32 = arith.constant 0 : i32
    %c0_i32_0 = arith.constant 0 : i32
    return %arg0, %c0_i32, %arg1 : i32, i32, i32
  }
  func.func @transform_1(%arg0: i32, %arg1: i32) -> (i32, i32) {
    %c0_i32 = arith.constant 0 : i32
    %c0_i32_0 = arith.constant 0 : i32
    %c0_i32_1 = arith.constant 0 : i32
    return %c0_i32, %c0_i32_0 : i32, i32
  }
  func.func @transform_2(%arg0: i32, %arg1: i32) -> (i32, i32) {
    %c0_i32 = arith.constant 0 : i32
    %c0_i32_0 = arith.constant 0 : i32
    %c0_i32_1 = arith.constant 0 : i32
    return %c0_i32, %c0_i32_0 : i32, i32
  }
  func.func @transform_3(%arg0: i32, %arg1: i32) -> (i32, i32, i32) {
    %c0_i32 = arith.constant 0 : i32
    %c0_i32_0 = arith.constant 0 : i32
    return %arg0, %c0_i32, %arg1 : i32, i32, i32
  }
}

</mosaic_0001>

<llo_original>
// kernel: tpu_custom_call.1
$region0: #{tpu_custom_call.1}
  #allocation0 [shape = 'u32[]', space=smem, size = 0x4, offset = 0x4, fixed_abs, tag = 'smem constant byte address 0x4 - core index']
  #allocation1 [shape = 'u32[72,128]{1,0:T(1,128)}', space=vmem, size = 0x9000, scoped, tag = 'internal scratch']
  %s0 = inlined_call_operand.hbm [shape: bf16[2,64,256], index: 0, kind: input, shape index: {}]
  %s1 = inlined_call_operand.vmem [shape: bf16[10,64], index: 1, kind: input, shape index: {}]
  %s2 = inlined_call_operand.vmem [shape: f32[10,1], index: 2, kind: input, shape index: {}]
  %s3 = inlined_call_operand.vmem [shape: f32[2,10,256], index: 3, kind: output, shape index: {}]
  %s4 = sld [smem:[#allocation0]]
  $region26: #{tpu_custom_call.1} parent=0
    _
  %s6 = ssub.s32 1, %s4
  %s7 = scalar_select 0, %s6, %s4
  $region1: #{tpu_custom_call.1} parent=0
    #allocation2 [shape = 'u8[65536]{0}', space=vmem, size = 0x10000, scoped, tag = 'input window, operand 0, single buffered']
    #allocation3 [shape = 's32[1]{0}', space=sflag, size = 0x4, scoped, tag = 'scoped memory for tpu_custom_call.1']
    %8 = vsyncpa [#allocation3], 0
    // Predicated region
    $region2: #{tpu_custom_call.1} parent=1 // pred_check
      _
    $region3: #{tpu_custom_call.1} parent=1 // pred_check_branch
      %10 = sbr.rel (0) target = $region5
    $region4: #{tpu_custom_call.1} parent=1 // pred_region
      %12 = vsyncadd [#allocation3], 0
      %s13 = sshll.u32 %s0, 4
      %s14 = int_to_ptr.hbm [resolvable:$true] %s13
      %s15 = sshll.u32 [#allocation2], 4
      %s16 = int_to_ptr.vmem [resolvable:$true] %s15
      %21 = dma.hbm_to_vmem [thread:$0]  %s14, 2048, %s16, [#allocation3], 128, 128, 8
    $region5: #{tpu_custom_call.1} parent=1 // pred_fallthru
      _
    // Predicated region
    $region6: #{tpu_custom_call.1} parent=1 // pred_check
      _
    $region7: #{tpu_custom_call.1} parent=1 // pred_check_branch
      %23 = sbr.rel (0) target = $region9
    $region8: #{tpu_custom_call.1} parent=1 // pred_region
      _
    $region9: #{tpu_custom_call.1} parent=1 // pred_fallthru
      _
    // Predicated region
    $region10: #{tpu_custom_call.1} parent=1 // pred_check
      _
    $region11: #{tpu_custom_call.1} parent=1 // pred_check_branch
      %25 = sbr.rel (0) target = $region13
    $region12: #{tpu_custom_call.1} parent=1 // pred_region
      _
    $region13: #{tpu_custom_call.1} parent=1 // pred_fallthru
      _
    // Predicated region
    $region14: #{tpu_custom_call.1} parent=1 // pred_check
      _
    $region15: #{tpu_custom_call.1} parent=1 // pred_check_branch
      %27 = sbr.rel (0) target = $region17
    $region16: #{tpu_custom_call.1} parent=1 // pred_region
      %29 = dma.done [#allocation3], 2048
    $region17: #{tpu_custom_call.1} parent=1 // pred_fallthru
      _
    %v31 = vld [vmem:[%s1] sm:$0xf]
    %v32 = vld [vmem:[%s1 + $0x4] sm:$0x1]
    %v33 = vld [vmem:[%s2] sm:$0xff]
    %v34 = vld [vmem:[%s2 + $0x8] sm:$0x3]
    %v35 = vld [vmem:[#allocation2] sm:$0xff]
    %v36 = vld [vmem:[#allocation2 + $0x8] sm:$0xff]
    %v37 = vld [vmem:[#allocation2 + $0x10] sm:$0xff]
    %v38 = vld [vmem:[#allocation2 + $0x18] sm:$0xff]
    %v39 = vld [vmem:[#allocation2 + $0x20] sm:$0xff]
    %v40 = vld [vmem:[#allocation2 + $0x28] sm:$0xff]
    %v41 = vld [vmem:[#allocation2 + $0x30] sm:$0xff]
    %v42 = vld [vmem:[#allocation2 + $0x38] sm:$0xff]
    %44 = vset.pattern.permute.xlu0 0
    %45 = vperm.xlu0 %44, %v33
    %v46 = vpop.permute.xlu0 %45
    %49 = vset.pattern.permute.xlu0 0
    %50 = vperm.xlu0 %49, %v34
    %v51 = vpop.permute.xlu0 %50
    %v55 = vunpack.c.l.b16 %v31
    %v56 = vunpack.c.l.b16 %v32
    %v57 = vpack.c.b16 %v56, %v55
    %v66 = vunpack.c.l.b16 %v35
    %v67 = vunpack.c.h.b16 %v35
    %v68 = vunpack.c.l.b16 %v36
    %v69 = vunpack.c.h.b16 %v36
    %v70 = vunpack.c.l.b16 %v37
    %v71 = vunpack.c.h.b16 %v37
    %v72 = vunpack.c.l.b16 %v38
    %v73 = vunpack.c.h.b16 %v38
    %v74 = vunpack.c.l.b16 %v39
    %v75 = vunpack.c.h.b16 %v39
    %v76 = vunpack.c.l.b16 %v40
    %v77 = vunpack.c.h.b16 %v40
    %v78 = vunpack.c.l.b16 %v41
    %v79 = vunpack.c.h.b16 %v41
    %v80 = vunpack.c.l.b16 %v42
    %v81 = vunpack.c.h.b16 %v42
    %v82 = vpack.c.b16 %v68, %v66
    %v83 = vpack.c.b16 %v69, %v67
    %v84 = vpack.c.b16 %v72, %v70
    %v85 = vpack.c.b16 %v73, %v71
    %v86 = vpack.c.b16 %v76, %v74
    %v87 = vpack.c.b16 %v77, %v75
    %v88 = vpack.c.b16 %v80, %v78
    %v89 = vpack.c.b16 %v81, %v79
    %vm98 = vcmask 523264
    %v100 = vsel %vm98, %v57, 0
    %102 = vmatpush.bf16.msra.mxu0 0
    %103 = vmatpush.bf16.msra.mxu0 0
    %104 = vmatpush.bf16.msra.mxu0 0
    %105 = vmatpush.bf16.msra.mxu0 0
    %106 = vmatpush.bf16.msra.mxu0 %v88
    %107 = vmatpush.bf16.msra.mxu0 %v86
    %108 = vmatpush.bf16.msra.mxu0 %v84
    %109 = vmatpush.bf16.msra.mxu0 %v82
    %110 = vmatmul.bf16.gmra.mxu0 %v100
    %v111 = vpop.f32.mrf.mxu0
    %v112 = vadd.f32 %v46, %v111
    %v113 = vpop.f32.mrf.mxu0
    %v114 = vadd.f32 %v51, %v113
    %115 = vdwg.mxu0
    %116 = vmatpush.bf16.msra.mxu0 0
    %117 = vmatpush.bf16.msra.mxu0 0
    %118 = vmatpush.bf16.msra.mxu0 0
    %119 = vmatpush.bf16.msra.mxu0 0
    %120 = vmatpush.bf16.msra.mxu0 %v89
    %121 = vmatpush.bf16.msra.mxu0 %v87
    %122 = vmatpush.bf16.msra.mxu0 %v85
    %123 = vmatpush.bf16.msra.mxu0 %v83
    %124 = vmatmul.bf16.gmra.mxu0 %v100
    %v125 = vpop.f32.mrf.mxu0
    %v126 = vadd.f32 %v46, %v125
    %v127 = vpop.f32.mrf.mxu0
    %v128 = vadd.f32 %v51, %v127
    %129 = vdwg.mxu0
    %v130 = vmax.f32 %v112, 0.0
    %v131 = vmax.f32 %v126, 0.0
    %v132 = vmax.f32 %v114, 0.0
    %v133 = vmax.f32 %v128, 0.0
    %134 = vst [vmem:[%s3] sm:$0xff] %v130
    %135 = vst [vmem:[%s3 + $0x8] sm:$0xff] %v131
    %136 = vst [vmem:[%s3 + $0x10] sm:$0x3] %v132
    %137 = vst [vmem:[%s3 + $0x18] sm:$0x3] %v133
    %s138 = scalar_lea.vmem [#allocation2], 64
    %v139 = vld [vmem:[%s138] sm:$0xff]
    %v140 = vld [vmem:[%s138 + $0x8] sm:$0xff]
    %v141 = vld [vmem:[%s138 + $0x10] sm:$0xff]
    %v142 = vld [vmem:[%s138 + $0x18] sm:$0xff]
    %v143 = vld [vmem:[%s138 + $0x20] sm:$0xff]
    %v144 = vld [vmem:[%s138 + $0x28] sm:$0xff]
    %v145 = vld [vmem:[%s138 + $0x30] sm:$0xff]
    %v146 = vld [vmem:[%s138 + $0x38] sm:$0xff]
    %v155 = vunpack.c.l.b16 %v139
    %v156 = vunpack.c.h.b16 %v139
    %v157 = vunpack.c.l.b16 %v140
    %v158 = vunpack.c.h.b16 %v140
    %v159 = vunpack.c.l.b16 %v141
    %v160 = vunpack.c.h.b16 %v141
    %v161 = vunpack.c.l.b16 %v142
    %v162 = vunpack.c.h.b16 %v142
    %v163 = vunpack.c.l.b16 %v143
    %v164 = vunpack.c.h.b16 %v143
    %v165 = vunpack.c.l.b16 %v144
    %v166 = vunpack.c.h.b16 %v144
    %v167 = vunpack.c.l.b16 %v145
    %v168 = vunpack.c.h.b16 %v145
    %v169 = vunpack.c.l.b16 %v146
    %v170 = vunpack.c.h.b16 %v146
    %v171 = vpack.c.b16 %v157, %v155
    %v172 = vpack.c.b16 %v158, %v156
    %v173 = vpack.c.b16 %v161, %v159
    %v174 = vpack.c.b16 %v162, %v160
    %v175 = vpack.c.b16 %v165, %v163
    %v176 = vpack.c.b16 %v166, %v164
    %v177 = vpack.c.b16 %v169, %v167
    %v178 = vpack.c.b16 %v170, %v168
    %187 = vmatpush.bf16.msra.mxu0 0
    %188 = vmatpush.bf16.msra.mxu0 0
    %189 = vmatpush.bf16.msra.mxu0 0
    %190 = vmatpush.bf16.msra.mxu0 0
    %191 = vmatpush.bf16.msra.mxu0 %v177
    %192 = vmatpush.bf16.msra.mxu0 %v175
    %193 = vmatpush.bf16.msra.mxu0 %v173
    %194 = vmatpush.bf16.msra.mxu0 %v171
    %195 = vmatmul.bf16.gmra.mxu0 %v100
    %v196 = vpop.f32.mrf.mxu0
    %v197 = vadd.f32 %v46, %v196
    %v198 = vpop.f32.mrf.mxu0
    %v199 = vadd.f32 %v51, %v198
    %200 = vdwg.mxu0
    %201 = vmatpush.bf16.msra.mxu0 0
    %202 = vmatpush.bf16.msra.mxu0 0
    %203 = vmatpush.bf16.msra.mxu0 0
    %204 = vmatpush.bf16.msra.mxu0 0
    %205 = vmatpush.bf16.msra.mxu0 %v178
    %206 = vmatpush.bf16.msra.mxu0 %v176
    %207 = vmatpush.bf16.msra.mxu0 %v174
    %208 = vmatpush.bf16.msra.mxu0 %v172
    %209 = vmatmul.bf16.gmra.mxu0 %v100
    %v210 = vpop.f32.mrf.mxu0
    %v211 = vadd.f32 %v46, %v210
    %v212 = vpop.f32.mrf.mxu0
    %v213 = vadd.f32 %v51, %v212
    %214 = vdwg.mxu0
    %v215 = vmax.f32 %v197, 0.0
    %v216 = vmax.f32 %v211, 0.0
    %v217 = vmax.f32 %v199, 0.0
    %v218 = vmax.f32 %v213, 0.0
    %s219 = scalar_lea.vmem %s3, 32
    %220 = vst [vmem:[%s219] sm:$0xff] %v215
    %221 = vst [vmem:[%s219 + $0x8] sm:$0xff] %v216
    %222 = vst [vmem:[%s219 + $0x10] sm:$0x3] %v217
    %223 = vst [vmem:[%s219 + $0x18] sm:$0x3] %v218
    // Predicated region
    $region18: #{tpu_custom_call.1} parent=1 // pred_check
      _
    $region19: #{tpu_custom_call.1} parent=1 // pred_check_branch
      %225 = sbr.rel (0) target = $region21
    $region20: #{tpu_custom_call.1} parent=1 // pred_region
      _
    $region21: #{tpu_custom_call.1} parent=1 // pred_fallthru
      _
    // Predicated region
    $region22: #{tpu_custom_call.1} parent=1 // pred_check
      _
    $region23: #{tpu_custom_call.1} parent=1 // pred_check_branch
      %227 = sbr.rel (0) target = $region25
    $region24: #{tpu_custom_call.1} parent=1 // pred_region
      _
    $region25: #{tpu_custom_call.1} parent=1 // pred_fallthru
      _
    %228 = vsyncpa [#allocation3], 1

</llo_original>
